<compile_context>
chip_gen: v6e
topology: v6e:2x2x1
jax: 0.10.0
libtpu: 0.0.40
codegen_flags: <defaults>
</compile_context>

<pallas_src>
import functools

import jax
import jax.numpy as jnp
from jax.experimental import pallas as pl
from jax.experimental.pallas import tpu as pltpu


def _round_up(x, m):
    return ((x + m - 1) // m) * m


def _sublane(dtype):
    # Native sublane tile per dtype: 8 for 32-bit, 16 for bf16, 32 for int8/fp8.
    return max(8, 32 // jnp.dtype(dtype).itemsize)


def _gap_kernel(x_ref, o_ref, acc_ref, *, inv_hw, l, tl, need_mask):
    """Accumulate row sums of (TR, TL) blocks; emit (1, TR) means on last k."""
    k = pl.program_id(1)

    @pl.when(k == 0)
    def _():
        acc_ref[...] = jnp.zeros_like(acc_ref)

    # f32 accumulation (no-op cast for f32 inputs; on v5e/bf16 this is one
    # vconv per vreg, hidden under the HBM-bound DMA).
    x = x_ref[...].astype(jnp.float32)
    if need_mask:
        # Last lane block extends past H*W with undefined data; zero those
        # lanes (global lane index >= l) before accumulating.
        lane = jax.lax.broadcasted_iota(jnp.int32, x.shape, dimension=1)
        x = jnp.where(k * tl + lane < l, x, 0.0)

    # (TR, TL) -> (TR,) row sums, relayouted lane-dense into the (1, TR)
    # accumulator.  NOTE: rows of a padded edge *row* block sum undefined
    # data, but those land in out-of-range output lanes which Pallas masks on
    # the final store, so they are harmless — keep reductions row-local.
    acc_ref[...] += jnp.sum(x, axis=-1)[None, :]

    @pl.when(k == pl.num_programs(1) - 1)
    def _():
        o_ref[...] = (acc_ref[...] * inv_hw).astype(o_ref.dtype)


def _choose_tiles(r, l, itemsize, sub, target_bytes):
    """Pick (row_tile, lane_tile) so the padded input block ~= target_bytes."""
    padded_l = _round_up(l, 128)
    min_tr = r if r <= 128 else 128
    min_tr_padded = _round_up(min_tr, sub)

    if min_tr_padded * padded_l * itemsize <= target_bytes:
        # Full spatial extent fits in one block: single lane step, tile rows.
        tl = l
        rows = target_bytes // (padded_l * itemsize)
        tr = r if rows >= r else max(128, (rows // 128) * 128)
    else:
        # Large H*W: split the lane axis and accumulate across grid axis 1.
        tr = min_tr
        lanes = target_bytes // (min_tr_padded * itemsize)
        tl = max(128, (lanes // 128) * 128)
        if tl >= l:
            tl = l

    # v7x megacore: guarantee >= 2 steps on the "parallel" row axis when
    # possible so both TensorCores get work (no effect on v5e/v6e: 1 TC).
    if r >= 256:
        tr = min(tr, _round_up(-(-r // 2), 128))
    return tr, tl


def secure_global_average_pooling_2d(
    x, *, target_block_bytes=8 * 1024 * 1024, force_pallas=False
):
    """Global average pooling over (H, W) with keepdims, NCHW layout."""
    n, c, h, w = x.shape
    r = n * c
    l = h * w
    itemsize = jnp.dtype(x.dtype).itemsize

    # Small-L fast path (e.g. 7x7 CNN heads): <512 B per row makes the VMEM
    # side of each DMA short strided writes; a fused XLA reduce wins.
    # TODO(synk): a segment-sum Pallas path over a flat (S, 128) view could
    # keep these shapes on the kernel as well.
    if not force_pallas and l * itemsize < 512:
        return jnp.mean(x, axis=(2, 3), keepdims=True).astype(x.dtype)

    x2 = x.reshape(r, l)  # free, contiguous reshape for NCHW
    sub = _sublane(x.dtype)
    tr, tl = _choose_tiles(r, l, itemsize, sub, target_block_bytes)
    grid = (pl.cdiv(r, tr), pl.cdiv(l, tl))

    # Padded VMEM footprint: double-buffered input blocks + output blocks +
    # f32 accumulator scratch + headroom.  Set the scoped limit explicitly
    # (v5e defaults to 16 MiB) while staying well under v7x's 64 MiB physical.
    in_block = _round_up(tr, sub) * _round_up(tl, 128) * itemsize
    out_block = sub * _round_up(tr, 128) * itemsize
    acc_block = 8 * _round_up(tr, 128) * 4
    needed = 2 * in_block + 2 * out_block + acc_block + (2 << 20)
    vmem_limit = int(min(max(needed, 24 << 20), 56 << 20))

    kernel = functools.partial(
        _gap_kernel,
        inv_hw=1.0 / float(l),
        l=l,
        tl=tl,
        need_mask=(l % tl != 0),
    )

    out = pl.pallas_call(
        kernel,
        out_shape=jax.ShapeDtypeStruct((1, r), x.dtype),
        grid_spec=pltpu.PrefetchScalarGridSpec(
            num_scalar_prefetch=0,
            grid=grid,
            in_specs=[pl.BlockSpec((tr, tl), lambda i, k: (i, k))],
            # Lane-dense (1, TR) output block, resident across the reduction
            # (k) axis; reshaped to (N, C, 1, 1) below.
            out_specs=pl.BlockSpec((1, tr), lambda i, k: (0, i)),
            scratch_shapes=[pltpu.VMEM((1, tr), jnp.float32)],
        ),
        compiler_params=pltpu.CompilerParams(
            dimension_semantics=("parallel", "arbitrary"),
            vmem_limit_bytes=vmem_limit,
        ),
        cost_estimate=pl.CostEstimate(
            flops=r * l,
            transcendentals=0,
            bytes_accessed=r * l * itemsize + r * itemsize,
        ),
    )(x2)

    return out.reshape(n, c, 1, 1)


if __name__ == "__main__":
    def _ref(x):
        return jnp.mean(
            x.astype(jnp.float32), axis=(2, 3), keepdims=True
        ).astype(x.dtype)

    key = jax.random.PRNGKey(0)
    k1, k2, k3, k4, k5 = jax.random.split(key, 5)

    # 1) Primary check: small NCHW f32 input, single-block path.
    x = jax.random.normal(k1, (2, 4, 16, 16), dtype=jnp.float32)
    out = jax.block_until_ready(secure_global_average_pooling_2d(x))
    assert out.shape == (2, 4, 1, 1), out.shape
    assert out.dtype == x.dtype, out.dtype
    assert jnp.allclose(out, _ref(x), atol=1e-6, rtol=1e-6)

    # 2) Multi row-tile path (full-L blocks, masked edge row block, >=2
    #    "parallel" steps) via a shrunken block-size target.
    xb = jax.random.normal(k2, (3, 96, 16, 16), dtype=jnp.float32)
    outb = jax.block_until_ready(
        secure_global_average_pooling_2d(xb, target_block_bytes=256 * 1024)
    )
    assert jnp.allclose(outb, _ref(xb), atol=1e-5, rtol=1e-5)

    # 3) Lane-split accumulator path (grid axis 1 has 2 steps, l % tl == 0).
    xc = jax.random.normal(k3, (2, 8, 32, 64), dtype=jnp.float32)
    outc = jax.block_until_ready(
        secure_global_average_pooling_2d(xc, target_block_bytes=64 * 1024)
    )
    assert jnp.allclose(outc, _ref(xc), atol=1e-5, rtol=1e-5)

    # 4) Lane-split accumulator path with a masked edge lane block (l % tl != 0).
    xd = jax.random.normal(k4, (2, 8, 24, 40), dtype=jnp.float32)
    outd = jax.block_until_ready(
        secure_global_average_pooling_2d(xd, target_block_bytes=16 * 1024)
    )
    assert jnp.allclose(outd, _ref(xd), atol=1e-5, rtol=1e-5)

    # 5) bf16 input: f32 accumulation, cast back to bf16.
    xe = jax.random.normal(k5, (2, 4, 16, 16), dtype=jnp.bfloat16)
    oute = jax.block_until_ready(secure_global_average_pooling_2d(xe))
    assert oute.dtype == jnp.bfloat16
    assert jnp.allclose(
        oute.astype(jnp.float32), _ref(xe).astype(jnp.float32), atol=1e-2
    )

    print("KERNEL_OK")
</pallas_src>

<mosaic_0001>
module attributes {stable_mosaic.version = 11 : i64} {
  func.func @_gap_kernel(%arg0: i32, %arg1: i32, %arg2: memref<8x256xf32, #tpu.memory_space<vmem>>, %arg3: memref<1x8xf32, #tpu.memory_space<vmem>>, %arg4: memref<1x8xf32, #tpu.memory_space<vmem>>) attributes {dimension_semantics = [#tpu.dimension_semantics<parallel>, #tpu.dimension_semantics<arbitrary>], iteration_bounds = array<i64: 1, 1>, scalar_prefetch = 0 : i64, scratch_operands = 1 : i64, tpu.core_type = #tpu.core_type<tc>, window_params = [{transform_indices = @transform_0, window_bounds = array<i64: 8, 256>}, {transform_indices = @transform_1, window_bounds = array<i64: 1, 8>}]} {
    %c0_i32 = arith.constant 0 : i32
    %0 = arith.cmpi eq, %arg1, %c0_i32 : i32
    %1 = arith.extui %0 : i1 to i32
    %c0_i32_0 = arith.constant 0 : i32
    %2 = arith.cmpi ne, %1, %c0_i32_0 : i32
    scf.if %2 {
      %cst_8 = arith.constant 0.000000e+00 : f32
      %12 = vector.broadcast %cst_8 : f32 to vector<1x8xf32>
      %c0_9 = arith.constant 0 : index
      %c0_10 = arith.constant 0 : index
      %13 = vector.load %arg4[%c0_9, %c0_10] : memref<1x8xf32, #tpu.memory_space<vmem>>, vector<1x8xf32>
      tpu.vector_store %arg4[%c0_9, %c0_10], %12 {strides = array<i32>} : memref<1x8xf32, #tpu.memory_space<vmem>>, vector<1x8xf32>,
    } else {
    }
    %c0 = arith.constant 0 : index
    %c0_1 = arith.constant 0 : index
    %3 = vector.load %arg2[%c0, %c0_1] : memref<8x256xf32, #tpu.memory_space<vmem>>, vector<8x256xf32>
    %c0_2 = arith.constant 0 : index
    %c0_3 = arith.constant 0 : index
    %4 = vector.load %arg4[%c0_2, %c0_3] : memref<1x8xf32, #tpu.memory_space<vmem>>, vector<1x8xf32>
    %cst = arith.constant dense<0.000000e+00> : vector<8xf32>
    %5 = vector.multi_reduction <add>, %3, %cst [1] : vector<8x256xf32> to vector<8xf32>
    %6 = vector.shape_cast %5 : vector<8xf32> to vector<1x8xf32>
    %7 = arith.addf %4, %6 : vector<1x8xf32>
    %c0_4 = arith.constant 0 : index
    %c0_5 = arith.constant 0 : index
    %8 = vector.load %arg4[%c0_4, %c0_5] : memref<1x8xf32, #tpu.memory_space<vmem>>, vector<1x8xf32>
    tpu.vector_store %arg4[%c0_4, %c0_5], %7 {strides = array<i32>} : memref<1x8xf32, #tpu.memory_space<vmem>>, vector<1x8xf32>,
    %c0_i32_6 = arith.constant 0 : i32
    %9 = arith.cmpi eq, %arg1, %c0_i32_6 : i32
    %10 = arith.extui %9 : i1 to i32
    %c0_i32_7 = arith.constant 0 : i32
    %11 = arith.cmpi ne, %10, %c0_i32_7 : i32
    scf.if %11 {
      %c0_8 = arith.constant 0 : index
      %c0_9 = arith.constant 0 : index
      %12 = vector.load %arg4[%c0_8, %c0_9] : memref<1x8xf32, #tpu.memory_space<vmem>>, vector<1x8xf32>
      %cst_10 = arith.constant 3.906250e-03 : f32
      %13 = vector.broadcast %cst_10 : f32 to vector<1x8xf32>
      %14 = arith.mulf %12, %13 : vector<1x8xf32>
      %c0_11 = arith.constant 0 : index
      %c0_12 = arith.constant 0 : index
      %15 = vector.load %arg3[%c0_11, %c0_12] : memref<1x8xf32, #tpu.memory_space<vmem>>, vector<1x8xf32>
      tpu.vector_store %arg3[%c0_11, %c0_12], %14 {strides = array<i32>} : memref<1x8xf32, #tpu.memory_space<vmem>>, vector<1x8xf32>,
    } else {
    }
    return
  }
  func.func @transform_0(%arg0: i32, %arg1: i32) -> (i32, i32) {
    %c0_i32 = arith.constant 0 : i32
    return %arg0, %arg1 : i32, i32
  }
  func.func @transform_1(%arg0: i32, %arg1: i32) -> (i32, i32) {
    %c0_i32 = arith.constant 0 : i32
    %c0_i32_0 = arith.constant 0 : i32
    return %c0_i32, %arg0 : i32, i32
  }
}

</mosaic_0001>

<llo_original>
// kernel: tpu_custom_call.1
$region0: #{tpu_custom_call.1}
  #allocation0 [shape = 'u32[]', space=smem, size = 0x4, offset = 0x4, fixed_abs, tag = 'smem constant byte address 0x4 - core index']
  #allocation1 [shape = 'u32[144,128]{1,0:T(1,128)}', space=vmem, size = 0x12000, scoped, tag = 'internal scratch']
  #allocation2 [shape = 'f32[1,8]{1,0:T(1,128)}', space=vmem, size = 0x200, scoped, tag = 'scratch operand']
  %s0 = inlined_call_operand.hbm [shape: f32[8,256], index: 0, kind: input, shape index: {}]
  %s1 = inlined_call_operand.hbm [shape: f32[1,8], index: 1, kind: output, shape index: {}]
  %s2 = sld [smem:[#allocation0]]
  $region26: #{tpu_custom_call.1} parent=0
    _
  %s4 = ssub.s32 1, %s2
  %s5 = scalar_select 0, %s4, %s2
  $region1: #{tpu_custom_call.1} parent=0
    #allocation3 [shape = 'u8[8192]{0}', space=vmem, size = 0x2000, scoped, tag = 'input window, operand 0, single buffered']
    #allocation4 [shape = 's32[1]{0}', space=sflag, size = 0x4, scoped, tag = 'scoped memory for tpu_custom_call.1']
    #allocation5 [shape = 's32[1]{0}', space=sflag, size = 0x4, scoped, tag = 'scoped memory for tpu_custom_call.1']
    #allocation6 [shape = 'u8[512]{0}', space=vmem, size = 0x400, scoped, tag = 'output window, operand 0, single buffered']
    %6 = vsyncpa [#allocation4], 0
    %7 = vsyncpa [#allocation5], 0
    // Predicated region
    $region2: #{tpu_custom_call.1} parent=1 // pred_check
      _
    $region3: #{tpu_custom_call.1} parent=1 // pred_check_branch
      %9 = sbr.rel (0) target = $region5
    $region4: #{tpu_custom_call.1} parent=1 // pred_region
      %s11 = ssub.s32 256, 256
      %12 = vsyncadd [#allocation4], %s11
      %s14 = sshll.u32 [#allocation3], 4
      %s15 = int_to_ptr.vmem [resolvable:$true] %s14
      %17 = dma.hbm_to_vmem [thread:$0]  %s0, 256, %s15, [#allocation4]
    $region5: #{tpu_custom_call.1} parent=1 // pred_fallthru
      _
    // Predicated region
    $region6: #{tpu_custom_call.1} parent=1 // pred_check
      _
    $region7: #{tpu_custom_call.1} parent=1 // pred_check_branch
      %19 = sbr.rel (0) target = $region9
    $region8: #{tpu_custom_call.1} parent=1 // pred_region
      %20 = dma.done [#allocation4], 256
    $region9: #{tpu_custom_call.1} parent=1 // pred_fallthru
      _
    %p21 = scmp.eq.s32.totalorder 0, 0
    // Predicated region
    $region10: #{tpu_custom_call.1} parent=1 // pred_check
      %p22 = pneg %p21
    $region11: #{tpu_custom_call.1} parent=1 // pred_check_branch
      %24 = sbr.rel (%p22) target = $region13
    $region12: #{tpu_custom_call.1} parent=1 // pred_region
      %vm25 = vcmask 57344
      %26 = vst.msk [vmem:[#allocation2] sm:$0x1] %vm25, 0.0
    $region13: #{tpu_custom_call.1} parent=1 // pred_fallthru
      _
    %v27 = vld [vmem:[#allocation3] sm:$0xff]
    %v28 = vld [vmem:[#allocation3 + $0x8] sm:$0xff]
    %v29 = vld [vmem:[#allocation2] sm:$0x1]
    %v30 = vadd.f32 %v27, %v28
    %31 = vadd.xlane.f32.xlu0 %v30
    %v32 = vpop.xlane.xlu0 %31
    %v34 = vlaneseq
    %v35 = vshrl.u32 %v34, 7
    %v36 = vsub.s32 0, %v35
    %v37 = vrot.slane %v32, %v36
    %v38 = vlaneseq
    %v39 = vshrl.u32 %v38, 7
    %v40 = vsub.s32 1, %v39
    %v41 = vrot.slane %v32, %v40
    %v42 = vlaneseq
    %v43 = vshrl.u32 %v42, 7
    %v44 = vsub.s32 2, %v43
    %v45 = vrot.slane %v32, %v44
    %v46 = vlaneseq
    %v47 = vshrl.u32 %v46, 7
    %v48 = vsub.s32 3, %v47
    %v49 = vrot.slane %v32, %v48
    %v50 = vlaneseq
    %v51 = vshrl.u32 %v50, 7
    %v52 = vsub.s32 4, %v51
    %v53 = vrot.slane %v32, %v52
    %v54 = vlaneseq
    %v55 = vshrl.u32 %v54, 7
    %v56 = vsub.s32 5, %v55
    %v57 = vrot.slane %v32, %v56
    %v58 = vlaneseq
    %v59 = vshrl.u32 %v58, 7
    %v60 = vsub.s32 6, %v59
    %v61 = vrot.slane %v32, %v60
    %v62 = vlaneseq
    %v63 = vshrl.u32 %v62, 7
    %v64 = vsub.s32 7, %v63
    %v65 = vrot.slane %v32, %v64
    %v66 = vcombine.low %v37, %v41
    %v67 = vcombine.low %v45, %v49
    %v68 = vcombine.low %v53, %v57
    %v69 = vcombine.low %v61, %v65
    %v71 = vunpack.c.l.s4 1966171168
    %v72 = vunpack.c.0.s8 %v71
    %v73 = vlaneseq
    %v74 = vshrl.u32 %v73, 7
    %v75 = vsub.s32 %v72, %v74
    %v76 = vrot.slane %v66, %v75
    %v78 = vunpack.c.l.s4 1966171168
    %v79 = vunpack.c.0.s8 %v78
    %v80 = vlaneseq
    %v81 = vshrl.u32 %v80, 7
    %v82 = vsub.s32 %v79, %v81
    %v83 = vrot.slane %v67, %v82
    %v85 = vunpack.c.l.s4 1966171168
    %v86 = vunpack.c.0.s8 %v85
    %v87 = vlaneseq
    %v88 = vshrl.u32 %v87, 7
    %v89 = vsub.s32 %v86, %v88
    %v90 = vrot.slane %v68, %v89
    %v92 = vunpack.c.l.s4 1966171168
    %v93 = vunpack.c.0.s8 %v92
    %v94 = vlaneseq
    %v95 = vshrl.u32 %v94, 7
    %v96 = vsub.s32 %v93, %v95
    %v97 = vrot.slane %v69, %v96
    %v98 = vcombine.low %v76, %v83
    %v99 = vcombine.low %v90, %v97
    %v101 = vunpack.c.l.s4 1966171168
    %v102 = vunpack.c.0.s8 %v101
    %v103 = vlaneseq
    %v104 = vshrl.u32 %v103, 7
    %v105 = vsub.s32 %v102, %v104
    %v106 = vrot.slane %v98, %v105
    %v108 = vunpack.c.l.s4 1966171168
    %v109 = vunpack.c.0.s8 %v108
    %v110 = vlaneseq
    %v111 = vshrl.u32 %v110, 7
    %v112 = vsub.s32 %v109, %v111
    %v113 = vrot.slane %v99, %v112
    %v114 = vcombine.low %v106, %v113
    %115 = vset.pattern.permute.xlu0 0
    %116 = vperm.xlu0 %115, %v114
    %v117 = vpop.permute.xlu0 %116
    %v118 = vlaneseq
    %v119 = vand.u32 %v118, 127
    %v120 = vlaneseq
    %v121 = vshrl.u32 %v120, 7
    %v122 = vsub.s32 %v119, %v121
    %v123 = vrot.slane %v117, %v122
    %v125 = vunpack.c.l.s4 1966171168
    %v126 = vunpack.c.0.s8 %v125
    %v127 = vlaneseq
    %v128 = vshrl.u32 %v127, 7
    %v129 = vsub.s32 %v126, %v128
    %v130 = vrot.slane %v123, %v129
    %v132 = vunpack.c.l.s4 1966171168
    %v133 = vunpack.c.0.s8 %v132
    %v134 = vlaneseq
    %v135 = vshrl.u32 %v134, 7
    %v136 = vsub.s32 %v133, %v135
    %v137 = vrot.slane %v130, %v136
    %v139 = vadd.f32 %v29, %v137
    %vm140 = vcmask 57344
    %141 = vst.msk [vmem:[#allocation2] sm:$0x1] %vm140, %v139
    // Predicated region
    $region14: #{tpu_custom_call.1} parent=1 // pred_check
      %p142 = pneg %p21
    $region15: #{tpu_custom_call.1} parent=1 // pred_check_branch
      %144 = sbr.rel (%p142) target = $region17
    $region16: #{tpu_custom_call.1} parent=1 // pred_region
      %v145 = vld [vmem:[#allocation2] sm:$0x1]
      %v146 = vmul.f32 %v145, 0.00390625
      %147 = vst.msk [vmem:[#allocation6] sm:$0x1] %vm140, %v146
    $region17: #{tpu_custom_call.1} parent=1 // pred_fallthru
      _
    // Predicated region
    $region18: #{tpu_custom_call.1} parent=1 // pred_check
      _
    $region19: #{tpu_custom_call.1} parent=1 // pred_check_branch
      %149 = sbr.rel (0) target = $region21
    $region20: #{tpu_custom_call.1} parent=1 // pred_region
      %s151 = ssub.s32 16, 16
      %152 = vsyncadd [#allocation5], %s151
      %s154 = sshll.u32 [#allocation6], 4
      %s155 = int_to_ptr.vmem [resolvable:$true] %s154
      %157 = dma.vmem_to_hbm [thread:$0]  %s155, 16, %s1, [#allocation5]
    $region21: #{tpu_custom_call.1} parent=1 // pred_fallthru
      _
    // Predicated region
    $region22: #{tpu_custom_call.1} parent=1 // pred_check
      _
    $region23: #{tpu_custom_call.1} parent=1 // pred_check_branch
      %159 = sbr.rel (0) target = $region25
    $region24: #{tpu_custom_call.1} parent=1 // pred_region
      %160 = dma.done [#allocation5], 16
    $region25: #{tpu_custom_call.1} parent=1 // pred_fallthru
      _
    %161 = vsyncpa [#allocation4], 1
    %162 = vsyncpa [#allocation5], 1

</llo_original>
